<compile_context>
chip_gen: v6e
topology: v6e:2x2x1
jax: 0.10.0
libtpu: 0.0.40
codegen_flags: <defaults>
</compile_context>

<pallas_src>
import functools

import jax
import jax.numpy as jnp
from jax.experimental import pallas as pl
from jax.experimental.pallas import tpu as pltpu


def _round_up(x, m):
    return (x + m - 1) // m * m


def dropout_net_kernel(x_ref, w1_ref, b1_ref, w2t_ref, b2_ref, *rest, use_dropout):
    if use_dropout:
        m1_ref, m2_ref, o_ref = rest
    else:
        (o_ref,) = rest

    # fc1: (TB, D) @ (D, H) on the MXU, bf16 inputs, f32 accumulation.
    h = jnp.dot(x_ref[...], w1_ref[...], preferred_element_type=jnp.float32)
    h = h + b1_ref[...]

    # dropout 1 (inverted-dropout: mask is 0 or 1/(1-p0), f32 elementwise on the VPU)
    if use_dropout:
        h = h * m1_ref[...]

    # relu
    h = jnp.maximum(h, jnp.float32(0.0))

    # fc2 with out_features == 1: VPU multiply + lane reduction (avoids a ~99% wasted MXU op).
    # w2t_ref is the pre-transposed weight row, shape (1, H).
    y = jnp.sum(h * w2t_ref[...], axis=-1)          # (TB,)
    y = y + b2_ref[0, 0]                            # scalar bias from SMEM
    y = y.reshape(1, -1)                            # lane-dense (1, TB)

    # dropout 2
    if use_dropout:
        y = y * m2_ref[...]

    o_ref[...] = y.astype(o_ref.dtype)


def dropout_net(x, w1, b1, w2, b2, p, *, key=None, training=True):
    """Forward pass of DropoutNet. x: (B, D), w1: (D, H), b1: (1, H), w2: (H, 1), b2: (1, 1)."""
    B, D = x.shape
    H = w1.shape[1]

    # Batch tiling: TB rows per grid step; weights stay resident across the grid.
    TB = min(512, _round_up(B, 8))
    B_pad = _round_up(B, TB)
    G = B_pad // TB

    if B_pad != B:
        x = jnp.pad(x, ((0, B_pad - B), (0, 0)))

    # bf16 inputs for the fc1 MXU path (accumulation stays f32 in-kernel).
    x_bf = x.astype(jnp.bfloat16)
    w1_bf = w1.astype(jnp.bfloat16)
    b1_f = b1.reshape(1, H).astype(jnp.float32)
    w2t = w2.reshape(1, H).astype(jnp.float32)   # pre-transposed (H,1) -> (1,H)
    b2_f = b2.reshape(1, 1).astype(jnp.float32)

    p0, p1 = float(p[0]), float(p[1])
    use_dropout = bool(training) and (p0 > 0.0 or p1 > 0.0)

    inputs = [x_bf, w1_bf, b1_f, w2t, b2_f]
    in_specs = [
        pl.BlockSpec((TB, D), lambda i: (i, 0)),                  # x tile
        pl.BlockSpec((D, H), lambda i: (0, 0)),                   # W1 resident
        pl.BlockSpec((1, H), lambda i: (0, 0)),                   # b1 resident
        pl.BlockSpec((1, H), lambda i: (0, 0)),                   # w2 row resident
        pl.BlockSpec(memory_space=pltpu.MemorySpace.SMEM),        # b2 scalar in SMEM
    ]

    if use_dropout:
        if key is None:
            raise ValueError("training=True with nonzero dropout requires a PRNG key")
        k1, k2 = jax.random.split(key)
        keep1, keep2 = 1.0 - p0, 1.0 - p1
        m1 = jax.random.bernoulli(k1, keep1, (B_pad, H)).astype(jnp.float32) * (1.0 / keep1)
        m2 = jax.random.bernoulli(k2, keep2, (G, TB)).astype(jnp.float32) * (1.0 / keep2)
        inputs += [m1, m2]
        in_specs += [
            pl.BlockSpec((TB, H), lambda i: (i, 0)),              # dropout-1 mask tile
            pl.BlockSpec((1, TB), lambda i: (i, 0)),              # dropout-2 mask (lane-dense)
        ]

    kernel = functools.partial(dropout_net_kernel, use_dropout=use_dropout)

    flops = int(2 * B_pad * D * H + 5 * B_pad * H)
    bytes_accessed = int(sum(int(a.size) * a.dtype.itemsize for a in inputs) + G * TB * 4)

    out = pl.pallas_call(
        kernel,
        out_shape=jax.ShapeDtypeStruct((G, TB), jnp.float32),     # lane-dense output slab
        grid_spec=pltpu.PrefetchScalarGridSpec(
            num_scalar_prefetch=0,
            grid=(G,),
            in_specs=in_specs,
            out_specs=pl.BlockSpec((1, TB), lambda i: (i, 0)),
        ),
        compiler_params=pltpu.CompilerParams(
            dimension_semantics=("parallel",),                    # batch tiles shard across TCs
        ),
        cost_estimate=pl.CostEstimate(
            flops=flops, transcendentals=0, bytes_accessed=bytes_accessed
        ),
    )(*inputs)

    # (G, TB) lane-dense -> (B, 1) module output layout.
    return out.reshape(B_pad)[:B].reshape(B, 1)


if __name__ == "__main__":
    # Small shapes consistent with the module: batch=8, input_size=32, hidden_size=64.
    B, D, H = 8, 32, 64
    p = (0.2, 0.1)

    key = jax.random.PRNGKey(0)
    kx, k1, kb1, k2, kb2, kdrop = jax.random.split(key, 6)

    x = jax.random.normal(kx, (B, D), dtype=jnp.float32)

    # Deterministic nn.Linear-style init: U(-1/sqrt(fan_in), 1/sqrt(fan_in))
    bnd1 = 1.0 / (D ** 0.5)
    w1 = jax.random.uniform(k1, (D, H), jnp.float32, -bnd1, bnd1)
    b1 = jax.random.uniform(kb1, (1, H), jnp.float32, -bnd1, bnd1)
    bnd2 = 1.0 / (H ** 0.5)
    w2 = jax.random.uniform(k2, (H, 1), jnp.float32, -bnd2, bnd2)
    b2 = jax.random.uniform(kb2, (1, 1), jnp.float32, -bnd2, bnd2)

    # Eval mode (dropout = identity): check against a pure-JAX reference with matching bf16 fc1.
    out_eval = dropout_net(x, w1, b1, w2, b2, p, training=False)
    jax.block_until_ready(out_eval)
    h_ref = jnp.dot(x.astype(jnp.bfloat16), w1.astype(jnp.bfloat16),
                    preferred_element_type=jnp.float32) + b1
    ref = jnp.maximum(h_ref, 0.0) @ w2 + b2
    assert out_eval.shape == (B, 1)
    assert jnp.allclose(out_eval, ref, atol=1e-3, rtol=1e-3)

    # Training mode: inverted-dropout masks generated host-side, applied inside the kernel.
    out_train = dropout_net(x, w1, b1, w2, b2, p, key=kdrop, training=True)
    jax.block_until_ready(out_train)
    assert out_train.shape == (B, 1)
    assert bool(jnp.all(jnp.isfinite(out_train)))

    print("KERNEL_OK")
</pallas_src>

<mosaic_0001>
module attributes {stable_mosaic.version = 11 : i64} {
  func.func @dropout_net_kernel(%arg0: i32, %arg1: memref<8x32xbf16, #tpu.memory_space<vmem>>, %arg2: memref<32x64xbf16, #tpu.memory_space<vmem>>, %arg3: memref<1x64xf32, #tpu.memory_space<vmem>>, %arg4: memref<1x64xf32, #tpu.memory_space<vmem>>, %arg5: memref<1x1xf32, #tpu.memory_space<smem>>, %arg6: memref<1x8xf32, #tpu.memory_space<vmem>>) attributes {dimension_semantics = [#tpu.dimension_semantics<parallel>], iteration_bounds = array<i64: 1>, scalar_prefetch = 0 : i64, scratch_operands = 0 : i64, tpu.core_type = #tpu.core_type<tc>, window_params = [{transform_indices = @transform_0, window_bounds = array<i64: 8, 32>}, {pipeline_mode = #tpu.pipeline_mode<synchronous>, transform_indices = @transform_1, window_bounds = array<i64: 32, 64>}, {pipeline_mode = #tpu.pipeline_mode<synchronous>, transform_indices = @transform_2, window_bounds = array<i64: 1, 64>}, {pipeline_mode = #tpu.pipeline_mode<synchronous>, transform_indices = @transform_3, window_bounds = array<i64: 1, 64>}, {transform_indices = @transform_4, window_bounds = array<i64: 1, 1>}, {transform_indices = @transform_5, window_bounds = array<i64: 1, 8>}]} {
    %c0 = arith.constant 0 : index
    %c0_0 = arith.constant 0 : index
    %0 = vector.load %arg1[%c0, %c0_0] : memref<8x32xbf16, #tpu.memory_space<vmem>>, vector<8x32xbf16>
    %c0_1 = arith.constant 0 : index
    %c0_2 = arith.constant 0 : index
    %1 = vector.load %arg2[%c0_1, %c0_2] : memref<32x64xbf16, #tpu.memory_space<vmem>>, vector<32x64xbf16>
    %cst = arith.constant dense<0.000000e+00> : vector<8x64xf32>
    %2 = tpu.matmul %0, %1, %cst {dimension_numbers = #tpu.dot_dimension_numbers<[1], [0], [0], [1], [0, 0, 1, 1], [], []>} : vector<8x32xbf16>, vector<32x64xbf16>, vector<8x64xf32> -> vector<8x64xf32>
    %c0_3 = arith.constant 0 : index
    %c0_4 = arith.constant 0 : index
    %3 = vector.load %arg3[%c0_3, %c0_4] : memref<1x64xf32, #tpu.memory_space<vmem>>, vector<1x64xf32>
    %4 = vector.broadcast %3 : vector<1x64xf32> to vector<8x64xf32>
    %5 = arith.addf %2, %4 : vector<8x64xf32>
    %cst_5 = arith.constant 0.000000e+00 : f32
    %6 = vector.broadcast %cst_5 : f32 to vector<8x64xf32>
    %7 = arith.maximumf %5, %6 : vector<8x64xf32>
    %c0_6 = arith.constant 0 : index
    %c0_7 = arith.constant 0 : index
    %8 = vector.load %arg4[%c0_6, %c0_7] : memref<1x64xf32, #tpu.memory_space<vmem>>, vector<1x64xf32>
    %9 = vector.broadcast %8 : vector<1x64xf32> to vector<8x64xf32>
    %10 = arith.mulf %7, %9 : vector<8x64xf32>
    %cst_8 = arith.constant dense<0.000000e+00> : vector<8xf32>
    %11 = vector.multi_reduction <add>, %10, %cst_8 [1] : vector<8x64xf32> to vector<8xf32>
    %c0_9 = arith.constant 0 : index
    %c0_10 = arith.constant 0 : index
    %12 = memref.load %arg5[%c0_9, %c0_10] : memref<1x1xf32, #tpu.memory_space<smem>>
    %13 = vector.broadcast %12 : f32 to vector<8xf32>
    %14 = arith.addf %11, %13 : vector<8xf32>
    %15 = vector.shape_cast %14 : vector<8xf32> to vector<1x8xf32>
    %c0_11 = arith.constant 0 : index
    %c0_12 = arith.constant 0 : index
    %16 = vector.load %arg6[%c0_11, %c0_12] : memref<1x8xf32, #tpu.memory_space<vmem>>, vector<1x8xf32>
    tpu.vector_store %arg6[%c0_11, %c0_12], %15 {strides = array<i32>} : memref<1x8xf32, #tpu.memory_space<vmem>>, vector<1x8xf32>,
    return
  }
  func.func @transform_0(%arg0: i32) -> (i32, i32) {
    %c0_i32 = arith.constant 0 : i32
    %c0_i32_0 = arith.constant 0 : i32
    return %arg0, %c0_i32 : i32, i32
  }
  func.func @transform_1(%arg0: i32) -> (i32, i32) {
    %c0_i32 = arith.constant 0 : i32
    %c0_i32_0 = arith.constant 0 : i32
    %c0_i32_1 = arith.constant 0 : i32
    return %c0_i32, %c0_i32_0 : i32, i32
  }
  func.func @transform_2(%arg0: i32) -> (i32, i32) {
    %c0_i32 = arith.constant 0 : i32
    %c0_i32_0 = arith.constant 0 : i32
    %c0_i32_1 = arith.constant 0 : i32
    return %c0_i32, %c0_i32_0 : i32, i32
  }
  func.func @transform_3(%arg0: i32) -> (i32, i32) {
    %c0_i32 = arith.constant 0 : i32
    %c0_i32_0 = arith.constant 0 : i32
    %c0_i32_1 = arith.constant 0 : i32
    return %c0_i32, %c0_i32_0 : i32, i32
  }
  func.func @transform_4(%arg0: i32) -> (i32, i32) {
    %c0_i32 = arith.constant 0 : i32
    %c0_i32_0 = arith.constant 0 : i32
    %c0_i32_1 = arith.constant 0 : i32
    return %c0_i32, %c0_i32_0 : i32, i32
  }
  func.func @transform_5(%arg0: i32) -> (i32, i32) {
    %c0_i32 = arith.constant 0 : i32
    %c0_i32_0 = arith.constant 0 : i32
    return %arg0, %c0_i32 : i32, i32
  }
}

</mosaic_0001>

<llo_original>
// kernel: tpu_custom_call.1
$region0: #{tpu_custom_call.1}
  #allocation0 [shape = 'u32[]', space=smem, size = 0x4, offset = 0x4, fixed_abs, tag = 'smem constant byte address 0x4 - core index']
  #allocation1 [shape = 'u32[144,128]{1,0:T(1,128)}', space=vmem, size = 0x12000, scoped, tag = 'internal scratch']
  #allocation2 [shape = 'f32[1,1]{1,0:T(1,128)S(6)}', space=smem, size = 0x200, scoped, tag = 'scoped memory for tpu_custom_call.1']
  %s0 = inlined_call_operand.hbm [shape: bf16[8,32], index: 0, kind: input, shape index: {}]
  %s1 = inlined_call_operand.hbm [shape: bf16[32,64], index: 1, kind: input, shape index: {}]
  %s2 = inlined_call_operand.vmem [shape: f32[1,64], index: 2, kind: input, shape index: {}]
  %s3 = inlined_call_operand.vmem [shape: f32[1,64], index: 3, kind: input, shape index: {}]
  %s4 = inlined_call_operand.<no memory space> [shape: f32[1,1], index: 4, kind: input, shape index: {}]
  %s5 = inlined_call_operand.hbm [shape: f32[1,8], index: 5, kind: output, shape index: {}]
  %s6 = sld [smem:[#allocation0]]
  $region38: #{tpu_custom_call.1} parent=0
    _
  %s8 = ssub.s32 1, %s6
  %s9 = scalar_select 0, %s8, %s6
  %10 = sst [smem:[#allocation2]] %s4
  $region1: #{tpu_custom_call.1} parent=0
    #allocation3 [shape = 'u8[2048]{0}', space=vmem, size = 0x800, scoped, tag = 'input window, operand 0, single buffered']
    #allocation4 [shape = 's32[1]{0}', space=sflag, size = 0x4, scoped, tag = 'scoped memory for tpu_custom_call.1']
    #allocation5 [shape = 's32[1]{0}', space=sflag, size = 0x4, scoped, tag = 'scoped memory for tpu_custom_call.1']
    #allocation6 [shape = 'u8[8192]{0}', space=vmem, size = 0x2000, scoped, tag = 'input window, operand 1, single buffered']
    #allocation7 [shape = 's32[1]{0}', space=sflag, size = 0x4, scoped, tag = 'scoped memory for tpu_custom_call.1']
    #allocation8 [shape = 'u8[512]{0}', space=vmem, size = 0x400, scoped, tag = 'output window, operand 0, single buffered']
    %11 = vsyncpa [#allocation4], 0
    %12 = vsyncpa [#allocation7], 0
    %13 = vsyncpa [#allocation5], 0
    // Predicated region
    $region2: #{tpu_custom_call.1} parent=1 // pred_check
      _
    $region3: #{tpu_custom_call.1} parent=1 // pred_check_branch
      %15 = sbr.rel (0) target = $region5
    $region4: #{tpu_custom_call.1} parent=1 // pred_region
      %s17 = ssub.s32 64, 64
      %18 = vsyncadd [#allocation4], %s17
      %s20 = sshll.u32 [#allocation3], 4
      %s21 = int_to_ptr.vmem [resolvable:$true] %s20
      %23 = dma.hbm_to_vmem [thread:$0]  %s0, 64, %s21, [#allocation4]
    $region5: #{tpu_custom_call.1} parent=1 // pred_fallthru
      _
    // Predicated region
    $region6: #{tpu_custom_call.1} parent=1 // pred_check
      _
    $region7: #{tpu_custom_call.1} parent=1 // pred_check_branch
      %25 = sbr.rel (0) target = $region9
    $region8: #{tpu_custom_call.1} parent=1 // pred_region
      %s27 = ssub.s32 256, 256
      %28 = vsyncadd [#allocation7], %s27
      %s29 = sshll.u32 [#allocation6], 4
      %s30 = int_to_ptr.vmem [resolvable:$true] %s29
      %35 = dma.hbm_to_vmem [thread:$0]  %s1, 256, %s30, [#allocation7], 64, 64, 4
    $region9: #{tpu_custom_call.1} parent=1 // pred_fallthru
      _
    // Predicated region
    $region10: #{tpu_custom_call.1} parent=1 // pred_check
      _
    $region11: #{tpu_custom_call.1} parent=1 // pred_check_branch
      %37 = sbr.rel (0) target = $region13
    $region12: #{tpu_custom_call.1} parent=1 // pred_region
      _
    $region13: #{tpu_custom_call.1} parent=1 // pred_fallthru
      _
    // Predicated region
    $region14: #{tpu_custom_call.1} parent=1 // pred_check
      _
    $region15: #{tpu_custom_call.1} parent=1 // pred_check_branch
      %39 = sbr.rel (0) target = $region17
    $region16: #{tpu_custom_call.1} parent=1 // pred_region
      _
    $region17: #{tpu_custom_call.1} parent=1 // pred_fallthru
      _
    // Predicated region
    $region18: #{tpu_custom_call.1} parent=1 // pred_check
      _
    $region19: #{tpu_custom_call.1} parent=1 // pred_check_branch
      %41 = sbr.rel (0) target = $region21
    $region20: #{tpu_custom_call.1} parent=1 // pred_region
      _
    $region21: #{tpu_custom_call.1} parent=1 // pred_fallthru
      _
    // Predicated region
    $region22: #{tpu_custom_call.1} parent=1 // pred_check
      _
    $region23: #{tpu_custom_call.1} parent=1 // pred_check_branch
      %43 = sbr.rel (0) target = $region25
    $region24: #{tpu_custom_call.1} parent=1 // pred_region
      %44 = dma.done [#allocation4], 64
    $region25: #{tpu_custom_call.1} parent=1 // pred_fallthru
      _
    // Predicated region
    $region26: #{tpu_custom_call.1} parent=1 // pred_check
      _
    $region27: #{tpu_custom_call.1} parent=1 // pred_check_branch
      %46 = sbr.rel (0) target = $region29
    $region28: #{tpu_custom_call.1} parent=1 // pred_region
      %47 = dma.done [#allocation7], 256
    $region29: #{tpu_custom_call.1} parent=1 // pred_fallthru
      _
    %v49 = vld [vmem:[#allocation3] sm:$0xf]
    %v50 = vld [vmem:[#allocation6] sm:$0xf]
    %v51 = vld [vmem:[#allocation6 + $0x4] sm:$0xf]
    %v52 = vld [vmem:[#allocation6 + $0x8] sm:$0xf]
    %v53 = vld [vmem:[#allocation6 + $0xc] sm:$0xf]
    %v54 = vld [vmem:[%s2] sm:$0x1]
    %v56 = vlaneseq
    %v57 = vshrl.u32 %v56, 7
    %v58 = vsub.s32 0, %v57
    %v59 = vrot.slane %v54, %v58
    %v65 = vunpack.c.l.b16 %v50
    %v66 = vunpack.c.l.b16 %v51
    %v67 = vunpack.c.l.b16 %v52
    %v68 = vunpack.c.l.b16 %v53
    %v69 = vpack.c.b16 %v66, %v65
    %v70 = vpack.c.b16 %v68, %v67
    %vm73 = vcmask 261120
    %v75 = vsel %vm73, %v49, 0
    %77 = vmatprep.subr.bf16.mxu0 0
    %78 = vmatpush1.bf16.msra.mxu0 0
    %79 = vmatprep.subr.bf16.mxu0 0
    %80 = vmatpush1.bf16.msra.mxu0 0
    %81 = vmatprep.subr.bf16.mxu0 0
    %82 = vmatpush1.bf16.msra.mxu0 0
    %83 = vmatprep.subr.bf16.mxu0 0
    %84 = vmatpush1.bf16.msra.mxu0 0
    %85 = vmatprep.subr.bf16.mxu0 0
    %86 = vmatpush1.bf16.msra.mxu0 0
    %87 = vmatprep.subr.bf16.mxu0 0
    %88 = vmatpush1.bf16.msra.mxu0 0
    %89 = vmatprep.subr.bf16.mxu0 0
    %90 = vmatpush1.bf16.msra.mxu0 %v70
    %91 = vmatprep.subr.bf16.mxu0 0
    %92 = vmatpush1.bf16.msra.mxu0 %v69
    %93 = vmatprep.subr.bf16.mxu0 0
    %94 = vmatpush2.bf16.msra.mxu0 0
    %95 = vmatprep.subr.bf16.mxu0 0
    %96 = vmatpush2.bf16.msra.mxu0 0
    %97 = vmatprep.subr.bf16.mxu0 0
    %98 = vmatpush2.bf16.msra.mxu0 0
    %99 = vmatprep.subr.bf16.mxu0 0
    %100 = vmatpush2.bf16.msra.mxu0 0
    %101 = vmatprep.subr.bf16.mxu0 0
    %102 = vmatpush2.bf16.msra.mxu0 0
    %103 = vmatprep.subr.bf16.mxu0 0
    %104 = vmatpush2.bf16.msra.mxu0 0
    %105 = vmatprep.subr.bf16.mxu0 0
    %106 = vmatpush2.bf16.msra.mxu0 0
    %107 = vmatprep.subr.bf16.mxu0 0
    %108 = vmatpush2.bf16.msra.mxu0 0
    %109 = vmatprep.mubr.bf16.mxu0 0
    %110 = vmatmul.mubr.bf16.gmra.mxu0 %v75
    %v111 = vpop.f32.mrf.mxu0
    %v112 = vadd.f32 %v59, %v111
    %v113 = vpop.f32.mrf.mxu0
    %v114 = vpop.f32.mrf.mxu0
    %v115 = vpop.f32.mrf.mxu0
    %116 = vdwg.mxu0
    %v117 = vmax.f32 %v112, 0.0
    %v118 = vld [vmem:[%s3] sm:$0x1]
    %v120 = vlaneseq
    %v121 = vshrl.u32 %v120, 7
    %v122 = vsub.s32 0, %v121
    %v123 = vrot.slane %v118, %v122
    %v125 = vmul.f32 %v117, %v123
    %vm126 = vcmask 523264
    %v127 = vsel %vm126, %v125, 0.0
    %128 = vadd.xlane.f32.xlu0 %v127
    %v129 = vpop.xlane.xlu0 %128
    %s130 = sld [smem:[#allocation2]]
    %v131 = vstv %s130
    %v132 = vadd.f32 %v129, %v131
    %v134 = vlaneseq
    %v135 = vand.u32 %v134, 127
    %v136 = vlaneseq
    %v137 = vshrl.u32 %v136, 7
    %v138 = vsub.s32 %v135, %v137
    %v139 = vrot.slane %v132, %v138
    %vm141 = vcmask 57344
    %142 = vst.msk [vmem:[#allocation8] sm:$0x1] %vm141, %v139
    // Predicated region
    $region30: #{tpu_custom_call.1} parent=1 // pred_check
      _
    $region31: #{tpu_custom_call.1} parent=1 // pred_check_branch
      %144 = sbr.rel (0) target = $region33
    $region32: #{tpu_custom_call.1} parent=1 // pred_region
      %s146 = ssub.s32 16, 16
      %147 = vsyncadd [#allocation5], %s146
      %s149 = sshll.u32 [#allocation8], 4
      %s150 = int_to_ptr.vmem [resolvable:$true] %s149
      %152 = dma.vmem_to_hbm [thread:$0]  %s150, 16, %s5, [#allocation5]
    $region33: #{tpu_custom_call.1} parent=1 // pred_fallthru
      _
    // Predicated region
    $region34: #{tpu_custom_call.1} parent=1 // pred_check
      _
    $region35: #{tpu_custom_call.1} parent=1 // pred_check_branch
      %154 = sbr.rel (0) target = $region37
    $region36: #{tpu_custom_call.1} parent=1 // pred_region
      %155 = dma.done [#allocation5], 16
    $region37: #{tpu_custom_call.1} parent=1 // pred_fallthru
      _
    %156 = vsyncpa [#allocation4], 1
    %157 = vsyncpa [#allocation7], 1
    %158 = vsyncpa [#allocation5], 1

</llo_original>
